<compile_context>
chip_gen: v5e
topology: v5e:2x2
jax: 0.10.0
libtpu: 0.0.40
codegen_flags: <defaults>
</compile_context>

<pallas_src>
import functools

import jax
import jax.numpy as jnp
from jax.experimental import pallas as pl
from jax.experimental.pallas import tpu as pltpu

EPS = 1e-6          # matches torch.nn.functional.pairwise_distance default eps
LANE = 128          # TPU lane width
SUBLANE = 8         # TPU sublane width
TB_MAX = 512        # batch tile: fits double-buffered on v5e/v6e/v7x VMEM


def _round_up(n, m):
    return ((n + m - 1) // m) * m


def _triplet_kernel(x_ref, y_ref, z_ref, w1_ref, b1_ref, w2_ref, b2_ref,
                    out_ref, *, feat_dim, cp):
    """One batch tile of all three branches + pairwise L2 distances.

    x/y/z_ref : [TB, D_in]      flattened input tiles (same batch rows)
    w1_ref    : [D_in, FP]      embedding weight  (FEAT zero-padded to FP=128k)
    b1_ref    : [1, FP]         embedding bias
    w2_ref    : [FP, CP]        classifier weight (classes zero-padded to CP)
    b2_ref    : [1, CP]         classifier bias
    out_ref   : [TB, 4*CP]      packed lane-dense slab:
                                [pred_x | pred_y | pred_z | dist block]
                                dist block: lane0 = dist_pos, lane1 = dist_neg
    """
    tb = x_ref.shape[0]
    fp = w1_ref.shape[1]

    w1 = w1_ref[...]
    b1 = b1_ref[...]
    w2 = w2_ref[...]
    b2 = b2_ref[...]

    # Fuse the three shared-net branches into one MXU matmul per layer.
    inp = jnp.concatenate([x_ref[...], y_ref[...], z_ref[...]], axis=0)
    feat = jnp.maximum(
        jnp.dot(inp, w1, preferred_element_type=jnp.float32) + b1, 0.0)
    pred = jnp.dot(feat, w2, preferred_element_type=jnp.float32) + b2

    feat_x = feat[0 * tb:1 * tb]
    feat_y = feat[1 * tb:2 * tb]
    feat_z = feat[2 * tb:3 * tb]

    # F.pairwise_distance(a, b, p=2): ||a - b + eps||_2 over the REAL feature
    # dim only -> mask the zero-padded feat lanes so they contribute nothing.
    lane_f = jax.lax.broadcasted_iota(jnp.int32, (tb, fp), 1)
    valid = lane_f < feat_dim
    d_pos = jnp.where(valid, feat_x - feat_y + EPS, 0.0)
    d_neg = jnp.where(valid, feat_x - feat_z + EPS, 0.0)
    dpos = jnp.sqrt(jnp.sum(d_pos * d_pos, axis=-1, keepdims=True))  # [TB, 1]
    dneg = jnp.sqrt(jnp.sum(d_neg * d_neg, axis=-1, keepdims=True))  # [TB, 1]

    # Lane-dense distance block: lane0 = dpos, lane1 = dneg, rest 0.
    lane_c = jax.lax.broadcasted_iota(jnp.int32, (tb, cp), 1)
    dist_block = jnp.where(lane_c == 0, dpos,
                           jnp.where(lane_c == 1, dneg, 0.0))

    # Full-width, 128-aligned stores into the packed output slab.
    out_ref[:, 0 * cp:1 * cp] = pred[0 * tb:1 * tb]
    out_ref[:, 1 * cp:2 * cp] = pred[1 * tb:2 * tb]
    out_ref[:, 2 * cp:3 * cp] = pred[2 * tb:3 * tb]
    out_ref[:, 3 * cp:4 * cp] = dist_block


def triplet_net_forward(x, y, z, w1, b1, w2, b2):
    """x, y, z: NCHW arrays [B, C, H, W] (float32)."""
    B = x.shape[0]
    d_in = x.shape[1] * x.shape[2] * x.shape[3]
    feat_dim = w1.shape[1]
    num_classes = w2.shape[1]

    # Pad feature / class dims to the 128-lane width (zeros are inert).
    fp = _round_up(feat_dim, LANE)
    cp = _round_up(num_classes, LANE)

    # Batch tile: multiple of 8 sublanes, capped at TB_MAX; pad B to a
    # multiple of the tile so every grid step sees a full tile (padded rows
    # are discarded in the wrapper).
    tb = min(TB_MAX, _round_up(B, SUBLANE))
    b_pad = _round_up(B, tb)

    xf = x.reshape(B, d_in).astype(jnp.float32)
    yf = y.reshape(B, d_in).astype(jnp.float32)
    zf = z.reshape(B, d_in).astype(jnp.float32)
    if b_pad != B:
        row_pad = ((0, b_pad - B), (0, 0))
        xf = jnp.pad(xf, row_pad)
        yf = jnp.pad(yf, row_pad)
        zf = jnp.pad(zf, row_pad)

    w1p = jnp.pad(w1.astype(jnp.float32), ((0, 0), (0, fp - feat_dim)))
    b1p = jnp.pad(b1.astype(jnp.float32), ((0, fp - feat_dim),)).reshape(1, fp)
    w2p = jnp.pad(w2.astype(jnp.float32),
                  ((0, fp - feat_dim), (0, cp - num_classes)))
    b2p = jnp.pad(b2.astype(jnp.float32),
                  ((0, cp - num_classes),)).reshape(1, cp)

    grid = (b_pad // tb,)

    kernel = functools.partial(_triplet_kernel, feat_dim=feat_dim, cp=cp)

    out = pl.pallas_call(
        kernel,
        out_shape=jax.ShapeDtypeStruct((b_pad, 4 * cp), jnp.float32),
        grid=grid,
        in_specs=[
            pl.BlockSpec((tb, d_in), lambda i: (i, 0)),   # x tile
            pl.BlockSpec((tb, d_in), lambda i: (i, 0)),   # y tile
            pl.BlockSpec((tb, d_in), lambda i: (i, 0)),   # z tile
            pl.BlockSpec((d_in, fp), lambda i: (0, 0)),   # w1: resident
            pl.BlockSpec((1, fp), lambda i: (0, 0)),      # b1: resident
            pl.BlockSpec((fp, cp), lambda i: (0, 0)),     # w2: resident
            pl.BlockSpec((1, cp), lambda i: (0, 0)),      # b2: resident
        ],
        out_specs=pl.BlockSpec((tb, 4 * cp), lambda i: (i, 0)),
        compiler_params=pltpu.CompilerParams(
            dimension_semantics=("parallel",),
            vmem_limit_bytes=48 * 1024 * 1024,
        ),
    )(xf, yf, zf, w1p, b1p, w2p, b2p)

    # Unpack the lane-dense slab; drop padded batch rows / padded classes.
    pred_x = out[:B, 0 * cp:0 * cp + num_classes]
    pred_y = out[:B, 1 * cp:1 * cp + num_classes]
    pred_z = out[:B, 2 * cp:2 * cp + num_classes]
    dist_pos = out[:B, 3 * cp]          # (B,) — matches torch pairwise_distance
    dist_neg = out[:B, 3 * cp + 1]
    return dist_pos, dist_neg, pred_x, pred_y, pred_z


def _reference(x, y, z, w1, b1, w2, b2):
    """Plain-JAX reference for correctness checking."""
    def net(inp):
        f = jnp.maximum(inp.reshape(inp.shape[0], -1) @ w1 + b1, 0.0)
        p = f @ w2 + b2
        return p, f
    px, fx = net(x)
    py, fy = net(y)
    pz, fz = net(z)
    dp = jnp.sqrt(jnp.sum((fx - fy + EPS) ** 2, axis=-1))
    dn = jnp.sqrt(jnp.sum((fx - fz + EPS) ** 2, axis=-1))
    return dp, dn, px, py, pz


if __name__ == "__main__":
    B, C, H, W = 2, 4, 16, 16
    D_IN = C * H * W          # 1024
    FEAT = 32
    NUM_CLASSES = 10

    key = jax.random.PRNGKey(0)
    kx, ky, kz, kw1, kb1, kw2, kb2 = jax.random.split(key, 7)

    x = jax.random.normal(kx, (B, C, H, W), dtype=jnp.float32)
    y = jax.random.normal(ky, (B, C, H, W), dtype=jnp.float32)
    z = jax.random.normal(kz, (B, C, H, W), dtype=jnp.float32)

    # Deterministic synthetic parameters for the shared net.
    w1 = jax.random.normal(kw1, (D_IN, FEAT), dtype=jnp.float32) * 0.02
    b1 = jax.random.normal(kb1, (FEAT,), dtype=jnp.float32) * 0.01
    w2 = jax.random.normal(kw2, (FEAT, NUM_CLASSES), dtype=jnp.float32) * 0.05
    b2 = jax.random.normal(kb2, (NUM_CLASSES,), dtype=jnp.float32) * 0.01

    outs = triplet_net_forward(x, y, z, w1, b1, w2, b2)
    outs = jax.block_until_ready(outs)

    refs = _reference(x, y, z, w1, b1, w2, b2)
    names = ("dist_pos", "dist_neg", "pred_x", "pred_y", "pred_z")
    for n, o, r in zip(names, outs, refs):
        assert o.shape == r.shape, (n, o.shape, r.shape)
        assert jnp.allclose(o, r, atol=1e-4, rtol=1e-4), n

    print("KERNEL_OK")
</pallas_src>

<mosaic_0001>
module attributes {stable_mosaic.version = 11 : i64} {
  func.func @_triplet_kernel(%arg0: i32, %arg1: memref<8x1024xf32, #tpu.memory_space<vmem>>, %arg2: memref<8x1024xf32, #tpu.memory_space<vmem>>, %arg3: memref<8x1024xf32, #tpu.memory_space<vmem>>, %arg4: memref<1024x128xf32, #tpu.memory_space<vmem>>, %arg5: memref<1x128xf32, #tpu.memory_space<vmem>>, %arg6: memref<128x128xf32, #tpu.memory_space<vmem>>, %arg7: memref<1x128xf32, #tpu.memory_space<vmem>>, %arg8: memref<8x512xf32, #tpu.memory_space<vmem>>) attributes {dimension_semantics = [#tpu.dimension_semantics<parallel>], iteration_bounds = array<i64: 1>, scalar_prefetch = 0 : i64, scratch_operands = 0 : i64, tpu.core_type = #tpu.core_type<tc>, window_params = [{transform_indices = @transform_0, window_bounds = array<i64: 8, 1024>}, {transform_indices = @transform_1, window_bounds = array<i64: 8, 1024>}, {transform_indices = @transform_2, window_bounds = array<i64: 8, 1024>}, {pipeline_mode = #tpu.pipeline_mode<synchronous>, transform_indices = @transform_3, window_bounds = array<i64: 1024, 128>}, {pipeline_mode = #tpu.pipeline_mode<synchronous>, transform_indices = @transform_4, window_bounds = array<i64: 1, 128>}, {pipeline_mode = #tpu.pipeline_mode<synchronous>, transform_indices = @transform_5, window_bounds = array<i64: 128, 128>}, {pipeline_mode = #tpu.pipeline_mode<synchronous>, transform_indices = @transform_6, window_bounds = array<i64: 1, 128>}, {transform_indices = @transform_7, window_bounds = array<i64: 8, 512>}]} {
    %c0 = arith.constant 0 : index
    %c0_0 = arith.constant 0 : index
    %0 = vector.load %arg4[%c0, %c0_0] : memref<1024x128xf32, #tpu.memory_space<vmem>>, vector<1024x128xf32>
    %c0_1 = arith.constant 0 : index
    %c0_2 = arith.constant 0 : index
    %1 = vector.load %arg5[%c0_1, %c0_2] : memref<1x128xf32, #tpu.memory_space<vmem>>, vector<1x128xf32>
    %c0_3 = arith.constant 0 : index
    %c0_4 = arith.constant 0 : index
    %2 = vector.load %arg6[%c0_3, %c0_4] : memref<128x128xf32, #tpu.memory_space<vmem>>, vector<128x128xf32>
    %c0_5 = arith.constant 0 : index
    %c0_6 = arith.constant 0 : index
    %3 = vector.load %arg7[%c0_5, %c0_6] : memref<1x128xf32, #tpu.memory_space<vmem>>, vector<1x128xf32>
    %c0_7 = arith.constant 0 : index
    %c0_8 = arith.constant 0 : index
    %4 = vector.load %arg1[%c0_7, %c0_8] : memref<8x1024xf32, #tpu.memory_space<vmem>>, vector<8x1024xf32>
    %c0_9 = arith.constant 0 : index
    %c0_10 = arith.constant 0 : index
    %5 = vector.load %arg2[%c0_9, %c0_10] : memref<8x1024xf32, #tpu.memory_space<vmem>>, vector<8x1024xf32>
    %c0_11 = arith.constant 0 : index
    %c0_12 = arith.constant 0 : index
    %6 = vector.load %arg3[%c0_11, %c0_12] : memref<8x1024xf32, #tpu.memory_space<vmem>>, vector<8x1024xf32>
    %7 = tpu.concatenate %4, %5, %6 in 0 : vector<8x1024xf32>, vector<8x1024xf32>, vector<8x1024xf32> -> vector<24x1024xf32>
    %cst = arith.constant dense<0.000000e+00> : vector<24x128xf32>
    %8 = tpu.matmul %7, %0, %cst {dimension_numbers = #tpu.dot_dimension_numbers<[1], [0], [0], [1], [0, 0, 1, 1], [], []>} : vector<24x1024xf32>, vector<1024x128xf32>, vector<24x128xf32> -> vector<24x128xf32>
    %9 = vector.broadcast %1 : vector<1x128xf32> to vector<24x128xf32>
    %10 = arith.addf %8, %9 : vector<24x128xf32>
    %cst_13 = arith.constant 0.000000e+00 : f32
    %11 = vector.broadcast %cst_13 : f32 to vector<24x128xf32>
    %12 = arith.maximumf %10, %11 : vector<24x128xf32>
    %cst_14 = arith.constant dense<0.000000e+00> : vector<24x128xf32>
    %13 = tpu.matmul %12, %2, %cst_14 {dimension_numbers = #tpu.dot_dimension_numbers<[1], [0], [0], [1], [0, 0, 1, 1], [], []>} : vector<24x128xf32>, vector<128x128xf32>, vector<24x128xf32> -> vector<24x128xf32>
    %14 = vector.broadcast %3 : vector<1x128xf32> to vector<24x128xf32>
    %15 = arith.addf %13, %14 : vector<24x128xf32>
    %16 = vector.extract_strided_slice %12 {offsets = [0, 0], sizes = [8, 128], strides = [1, 1]} : vector<24x128xf32> to vector<8x128xf32>
    %17 = vector.extract_strided_slice %12 {offsets = [8, 0], sizes = [8, 128], strides = [1, 1]} : vector<24x128xf32> to vector<8x128xf32>
    %18 = vector.extract_strided_slice %12 {offsets = [16, 0], sizes = [8, 128], strides = [1, 1]} : vector<24x128xf32> to vector<8x128xf32>
    %19 = tpu.iota {dimensions = array<i32: 1>} : vector<8x128xi32>
    %c32_i32 = arith.constant 32 : i32
    %20 = vector.broadcast %c32_i32 : i32 to vector<8x128xi32>
    %21 = arith.cmpi slt, %19, %20 : vector<8x128xi32>
    %22 = arith.subf %16, %17 : vector<8x128xf32>
    %cst_15 = arith.constant 9.99999997E-7 : f32
    %23 = vector.broadcast %cst_15 : f32 to vector<8x128xf32>
    %24 = arith.addf %22, %23 : vector<8x128xf32>
    %cst_16 = arith.constant 0.000000e+00 : f32
    %25 = vector.broadcast %cst_16 : f32 to vector<8x128xf32>
    %26 = arith.select %21, %24, %25 : vector<8x128xi1>, vector<8x128xf32>
    %27 = arith.subf %16, %18 : vector<8x128xf32>
    %cst_17 = arith.constant 9.99999997E-7 : f32
    %28 = vector.broadcast %cst_17 : f32 to vector<8x128xf32>
    %29 = arith.addf %27, %28 : vector<8x128xf32>
    %cst_18 = arith.constant 0.000000e+00 : f32
    %30 = vector.broadcast %cst_18 : f32 to vector<8x128xf32>
    %31 = arith.select %21, %29, %30 : vector<8x128xi1>, vector<8x128xf32>
    %32 = arith.mulf %26, %26 : vector<8x128xf32>
    %cst_19 = arith.constant dense<0.000000e+00> : vector<8xf32>
    %33 = vector.multi_reduction <add>, %32, %cst_19 [1] : vector<8x128xf32> to vector<8xf32>
    %34 = vector.shape_cast %33 : vector<8xf32> to vector<8x1xf32>
    %35 = math.sqrt %34 : vector<8x1xf32>
    %36 = arith.mulf %31, %31 : vector<8x128xf32>
    %cst_20 = arith.constant dense<0.000000e+00> : vector<8xf32>
    %37 = vector.multi_reduction <add>, %36, %cst_20 [1] : vector<8x128xf32> to vector<8xf32>
    %38 = vector.shape_cast %37 : vector<8xf32> to vector<8x1xf32>
    %39 = math.sqrt %38 : vector<8x1xf32>
    %40 = tpu.iota {dimensions = array<i32: 1>} : vector<8x128xi32>
    %c0_i32 = arith.constant 0 : i32
    %41 = vector.broadcast %c0_i32 : i32 to vector<8x128xi32>
    %42 = arith.cmpi eq, %40, %41 : vector<8x128xi32>
    %c1_i32 = arith.constant 1 : i32
    %43 = vector.broadcast %c1_i32 : i32 to vector<8x128xi32>
    %44 = arith.cmpi eq, %40, %43 : vector<8x128xi32>
    %cst_21 = arith.constant 0.000000e+00 : f32
    %45 = vector.shape_cast %39 : vector<8x1xf32> to vector<8x1xf32>
    %46 = vector.broadcast %45 : vector<8x1xf32> to vector<8x128xf32>
    %47 = vector.broadcast %cst_21 : f32 to vector<8x128xf32>
    %48 = arith.select %44, %46, %47 : vector<8x128xi1>, vector<8x128xf32>
    %49 = vector.shape_cast %35 : vector<8x1xf32> to vector<8x1xf32>
    %50 = vector.broadcast %49 : vector<8x1xf32> to vector<8x128xf32>
    %51 = arith.select %42, %50, %48 : vector<8x128xi1>, vector<8x128xf32>
    %52 = vector.extract_strided_slice %15 {offsets = [0, 0], sizes = [8, 128], strides = [1, 1]} : vector<24x128xf32> to vector<8x128xf32>
    %c0_22 = arith.constant 0 : index
    %c0_23 = arith.constant 0 : index
    %53 = vector.load %arg8[%c0_22, %c0_23] : memref<8x512xf32, #tpu.memory_space<vmem>>, vector<8x128xf32>
    tpu.vector_store %arg8[%c0_22, %c0_23], %52 {strides = array<i32>} : memref<8x512xf32, #tpu.memory_space<vmem>>, vector<8x128xf32>,
    %54 = vector.extract_strided_slice %15 {offsets = [8, 0], sizes = [8, 128], strides = [1, 1]} : vector<24x128xf32> to vector<8x128xf32>
    %c0_24 = arith.constant 0 : index
    %c128 = arith.constant 128 : index
    %55 = vector.load %arg8[%c0_24, %c128] : memref<8x512xf32, #tpu.memory_space<vmem>>, vector<8x128xf32>
    tpu.vector_store %arg8[%c0_24, %c128], %54 {strides = array<i32>} : memref<8x512xf32, #tpu.memory_space<vmem>>, vector<8x128xf32>,
    %56 = vector.extract_strided_slice %15 {offsets = [16, 0], sizes = [8, 128], strides = [1, 1]} : vector<24x128xf32> to vector<8x128xf32>
    %c0_25 = arith.constant 0 : index
    %c256 = arith.constant 256 : index
    %57 = vector.load %arg8[%c0_25, %c256] : memref<8x512xf32, #tpu.memory_space<vmem>>, vector<8x128xf32>
    tpu.vector_store %arg8[%c0_25, %c256], %56 {strides = array<i32>} : memref<8x512xf32, #tpu.memory_space<vmem>>, vector<8x128xf32>,
    %c0_26 = arith.constant 0 : index
    %c384 = arith.constant 384 : index
    %58 = vector.load %arg8[%c0_26, %c384] : memref<8x512xf32, #tpu.memory_space<vmem>>, vector<8x128xf32>
    tpu.vector_store %arg8[%c0_26, %c384], %51 {strides = array<i32>} : memref<8x512xf32, #tpu.memory_space<vmem>>, vector<8x128xf32>,
    return
  }
  func.func @transform_0(%arg0: i32) -> (i32, i32) {
    %c0_i32 = arith.constant 0 : i32
    %c0_i32_0 = arith.constant 0 : i32
    return %arg0, %c0_i32 : i32, i32
  }
  func.func @transform_1(%arg0: i32) -> (i32, i32) {
    %c0_i32 = arith.constant 0 : i32
    %c0_i32_0 = arith.constant 0 : i32
    return %arg0, %c0_i32 : i32, i32
  }
  func.func @transform_2(%arg0: i32) -> (i32, i32) {
    %c0_i32 = arith.constant 0 : i32
    %c0_i32_0 = arith.constant 0 : i32
    return %arg0, %c0_i32 : i32, i32
  }
  func.func @transform_3(%arg0: i32) -> (i32, i32) {
    %c0_i32 = arith.constant 0 : i32
    %c0_i32_0 = arith.constant 0 : i32
    %c0_i32_1 = arith.constant 0 : i32
    return %c0_i32, %c0_i32_0 : i32, i32
  }
  func.func @transform_4(%arg0: i32) -> (i32, i32) {
    %c0_i32 = arith.constant 0 : i32
    %c0_i32_0 = arith.constant 0 : i32
    %c0_i32_1 = arith.constant 0 : i32
    return %c0_i32, %c0_i32_0 : i32, i32
  }
  func.func @transform_5(%arg0: i32) -> (i32, i32) {
    %c0_i32 = arith.constant 0 : i32
    %c0_i32_0 = arith.constant 0 : i32
    %c0_i32_1 = arith.constant 0 : i32
    return %c0_i32, %c0_i32_0 : i32, i32
  }
  func.func @transform_6(%arg0: i32) -> (i32, i32) {
    %c0_i32 = arith.constant 0 : i32
    %c0_i32_0 = arith.constant 0 : i32
    %c0_i32_1 = arith.constant 0 : i32
    return %c0_i32, %c0_i32_0 : i32, i32
  }
  func.func @transform_7(%arg0: i32) -> (i32, i32) {
    %c0_i32 = arith.constant 0 : i32
    %c0_i32_0 = arith.constant 0 : i32
    return %arg0, %c0_i32 : i32, i32
  }
}

</mosaic_0001>

<llo_original>
// kernel: tpu_custom_call.1
$region0: #{tpu_custom_call.1}
  #allocation0 [shape = 'u32[]', space=smem, size = 0x4, offset = 0x4, fixed_abs, tag = 'smem constant byte address 0x4 - core index']
  #allocation1 [shape = 'u32[72,128]{1,0:T(1,128)}', space=vmem, size = 0x9000, scoped, tag = 'internal scratch']
  %s0 = inlined_call_operand.hbm [shape: f32[8,1024], index: 0, kind: input, shape index: {}]
  %s1 = inlined_call_operand.hbm [shape: f32[8,1024], index: 1, kind: input, shape index: {}]
  %s2 = inlined_call_operand.hbm [shape: f32[8,1024], index: 2, kind: input, shape index: {}]
  %s3 = inlined_call_operand.hbm [shape: f32[1024,128], index: 3, kind: input, shape index: {}]
  %s4 = inlined_call_operand.vmem [shape: f32[1,128], index: 4, kind: input, shape index: {}]
  %s5 = inlined_call_operand.hbm [shape: f32[128,128], index: 5, kind: input, shape index: {}]
  %s6 = inlined_call_operand.vmem [shape: f32[1,128], index: 6, kind: input, shape index: {}]
  %s7 = inlined_call_operand.hbm [shape: f32[8,512], index: 7, kind: output, shape index: {}]
  %s8 = sld [smem:[#allocation0]]
  $region58: #{tpu_custom_call.1} parent=0
    _
  %s10 = ssub.s32 1, %s8
  %s11 = scalar_select 0, %s10, %s8
  $region1: #{tpu_custom_call.1} parent=0
    #allocation2 [shape = 'u8[32768]{0}', space=vmem, size = 0x8000, scoped, tag = 'input window, operand 0, single buffered']
    #allocation3 [shape = 's32[1]{0}', space=sflag, size = 0x4, scoped, tag = 'scoped memory for tpu_custom_call.1']
    #allocation4 [shape = 's32[1]{0}', space=sflag, size = 0x4, scoped, tag = 'scoped memory for tpu_custom_call.1']
    #allocation5 [shape = 'u8[32768]{0}', space=vmem, size = 0x8000, scoped, tag = 'input window, operand 1, single buffered']
    #allocation6 [shape = 's32[1]{0}', space=sflag, size = 0x4, scoped, tag = 'scoped memory for tpu_custom_call.1']
    #allocation7 [shape = 'u8[32768]{0}', space=vmem, size = 0x8000, scoped, tag = 'input window, operand 2, single buffered']
    #allocation8 [shape = 'u8[524288]{0}', space=vmem, size = 0x80000, scoped, tag = 'input window, operand 3, single buffered']
    #allocation9 [shape = 's32[1]{0}', space=sflag, size = 0x4, scoped, tag = 'scoped memory for tpu_custom_call.1']
    #allocation10 [shape = 'u8[65536]{0}', space=vmem, size = 0x10000, scoped, tag = 'input window, operand 5, single buffered']
    #allocation11 [shape = 'u8[16384]{0}', space=vmem, size = 0x4000, scoped, tag = 'output window, operand 0, single buffered']
    %12 = vsyncpa [#allocation3], 0
    %13 = vsyncpa [#allocation6], 0
    %14 = vsyncpa [#allocation9], 0
    %15 = vsyncpa [#allocation4], 0
    // Predicated region
    $region2: #{tpu_custom_call.1} parent=1 // pred_check
      _
    $region3: #{tpu_custom_call.1} parent=1 // pred_check_branch
      %17 = sbr.rel (0) target = $region5
    $region4: #{tpu_custom_call.1} parent=1 // pred_region
      %19 = vsyncadd [#allocation3], 0
      %s21 = sshll.u32 %s0, 4
      %s22 = int_to_ptr.hbm [resolvable:$true] %s21
      %s23 = sshll.u32 [#allocation2], 4
      %s24 = int_to_ptr.vmem [resolvable:$true] %s23
      %26 = dma.hbm_to_vmem [thread:$0]  %s22, 1024, %s24, [#allocation3]
    $region5: #{tpu_custom_call.1} parent=1 // pred_fallthru
      _
    // Predicated region
    $region6: #{tpu_custom_call.1} parent=1 // pred_check
      _
    $region7: #{tpu_custom_call.1} parent=1 // pred_check_branch
      %28 = sbr.rel (0) target = $region9
    $region8: #{tpu_custom_call.1} parent=1 // pred_region
      %30 = vsyncadd [#allocation6], 0
      %s32 = sshll.u32 %s1, 4
      %s33 = int_to_ptr.hbm [resolvable:$true] %s32
      %s34 = sshll.u32 [#allocation5], 4
      %s35 = int_to_ptr.vmem [resolvable:$true] %s34
      %37 = dma.hbm_to_vmem [thread:$0]  %s33, 1024, %s35, [#allocation6]
    $region9: #{tpu_custom_call.1} parent=1 // pred_fallthru
      _
    // Predicated region
    $region10: #{tpu_custom_call.1} parent=1 // pred_check
      _
    $region11: #{tpu_custom_call.1} parent=1 // pred_check_branch
      %39 = sbr.rel (0) target = $region13
    $region12: #{tpu_custom_call.1} parent=1 // pred_region
      %41 = vsyncadd [#allocation6], 0
      %s43 = sshll.u32 %s2, 4
      %s44 = int_to_ptr.hbm [resolvable:$true] %s43
      %s45 = sshll.u32 [#allocation7], 4
      %s46 = int_to_ptr.vmem [resolvable:$true] %s45
      %48 = dma.hbm_to_vmem [thread:$0]  %s44, 1024, %s46, [#allocation6]
    $region13: #{tpu_custom_call.1} parent=1 // pred_fallthru
      _
    // Predicated region
    $region14: #{tpu_custom_call.1} parent=1 // pred_check
      _
    $region15: #{tpu_custom_call.1} parent=1 // pred_check_branch
      %50 = sbr.rel (0) target = $region17
    $region16: #{tpu_custom_call.1} parent=1 // pred_region
      %52 = vsyncadd [#allocation9], 0
      %s53 = sshll.u32 %s3, 4
      %s54 = int_to_ptr.hbm [resolvable:$true] %s53
      %s55 = sshll.u32 [#allocation8], 4
      %s56 = int_to_ptr.vmem [resolvable:$true] %s55
      %61 = dma.hbm_to_vmem [thread:$0]  %s54, 16384, %s56, [#allocation9], 128, 128, 8
    $region17: #{tpu_custom_call.1} parent=1 // pred_fallthru
      _
    // Predicated region
    $region18: #{tpu_custom_call.1} parent=1 // pred_check
      _
    $region19: #{tpu_custom_call.1} parent=1 // pred_check_branch
      %63 = sbr.rel (0) target = $region21
    $region20: #{tpu_custom_call.1} parent=1 // pred_region
      _
    $region21: #{tpu_custom_call.1} parent=1 // pred_fallthru
      _
    // Predicated region
    $region22: #{tpu_custom_call.1} parent=1 // pred_check
      _
    $region23: #{tpu_custom_call.1} parent=1 // pred_check_branch
      %65 = sbr.rel (0) target = $region25
    $region24: #{tpu_custom_call.1} parent=1 // pred_region
      %67 = vsyncadd [#allocation9], 0
      %s68 = sshll.u32 %s5, 4
      %s69 = int_to_ptr.hbm [resolvable:$true] %s68
      %s70 = sshll.u32 [#allocation10], 4
      %s71 = int_to_ptr.vmem [resolvable:$true] %s70
      %76 = dma.hbm_to_vmem [thread:$0]  %s69, 2048, %s71, [#allocation9], 128, 128, 8
    $region25: #{tpu_custom_call.1} parent=1 // pred_fallthru
      _
    // Predicated region
    $region26: #{tpu_custom_call.1} parent=1 // pred_check
      _
    $region27: #{tpu_custom_call.1} parent=1 // pred_check_branch
      %78 = sbr.rel (0) target = $region29
    $region28: #{tpu_custom_call.1} parent=1 // pred_region
      _
    $region29: #{tpu_custom_call.1} parent=1 // pred_fallthru
      _
    // Predicated region
    $region30: #{tpu_custom_call.1} parent=1 // pred_check
      _
    $region31: #{tpu_custom_call.1} parent=1 // pred_check_branch
      %80 = sbr.rel (0) target = $region33
    $region32: #{tpu_custom_call.1} parent=1 // pred_region
      %82 = dma.done [#allocation3], 1024
    $region33: #{tpu_custom_call.1} parent=1 // pred_fallthru
      _
    // Predicated region
    $region34: #{tpu_custom_call.1} parent=1 // pred_check
      _
    $region35: #{tpu_custom_call.1} parent=1 // pred_check_branch
      %84 = sbr.rel (0) target = $region37
    $region36: #{tpu_custom_call.1} parent=1 // pred_region
      %86 = dma.done [#allocation6], 1024
    $region37: #{tpu_custom_call.1} parent=1 // pred_fallthru
      _
    // Predicated region
    $region38: #{tpu_custom_call.1} parent=1 // pred_check
      _
    $region39: #{tpu_custom_call.1} parent=1 // pred_check_branch
      %88 = sbr.rel (0) target = $region41
    $region40: #{tpu_custom_call.1} parent=1 // pred_region
      %90 = dma.done [#allocation6], 1024
    $region41: #{tpu_custom_call.1} parent=1 // pred_fallthru
      _
    // Predicated region
    $region42: #{tpu_custom_call.1} parent=1 // pred_check
      _
    $region43: #{tpu_custom_call.1} parent=1 // pred_check_branch
      %92 = sbr.rel (0) target = $region45
    $region44: #{tpu_custom_call.1} parent=1 // pred_region
      %94 = dma.done [#allocation9], 16384
    $region45: #{tpu_custom_call.1} parent=1 // pred_fallthru
      _
    // Predicated region
    $region46: #{tpu_custom_call.1} parent=1 // pred_check
      _
    $region47: #{tpu_custom_call.1} parent=1 // pred_check_branch
      %96 = sbr.rel (0) target = $region49
    $region48: #{tpu_custom_call.1} parent=1 // pred_region
      %98 = dma.done [#allocation9], 2048
    $region49: #{tpu_custom_call.1} parent=1 // pred_fallthru
      _
    %v99 = vld [vmem:[#allocation8] sm:$0xff]
    %v100 = vld [vmem:[#allocation8 + $0x8] sm:$0xff]
    %v101 = vld [vmem:[#allocation8 + $0x10] sm:$0xff]
    %v102 = vld [vmem:[#allocation8 + $0x18] sm:$0xff]
    %v103 = vld [vmem:[#allocation8 + $0x20] sm:$0xff]
    %v104 = vld [vmem:[#allocation8 + $0x28] sm:$0xff]
    %v105 = vld [vmem:[#allocation8 + $0x30] sm:$0xff]
    %v106 = vld [vmem:[#allocation8 + $0x38] sm:$0xff]
    %v107 = vld [vmem:[#allocation8 + $0x40] sm:$0xff]
    %v108 = vld [vmem:[#allocation8 + $0x48] sm:$0xff]
    %v109 = vld [vmem:[#allocation8 + $0x50] sm:$0xff]
    %v110 = vld [vmem:[#allocation8 + $0x58] sm:$0xff]
    %v111 = vld [vmem:[#allocation8 + $0x60] sm:$0xff]
    %v112 = vld [vmem:[#allocation8 + $0x68] sm:$0xff]
    %v113 = vld [vmem:[#allocation8 + $0x70] sm:$0xff]
    %v114 = vld [vmem:[#allocation8 + $0x78] sm:$0xff]
    %v115 = vld [vmem:[#allocation8 + $0x80] sm:$0xff]
    %v116 = vld [vmem:[#allocation8 + $0x88] sm:$0xff]
    %v117 = vld [vmem:[#allocation8 + $0x90] sm:$0xff]
    %v118 = vld [vmem:[#allocation8 + $0x98] sm:$0xff]
    %v119 = vld [vmem:[#allocation8 + $0xa0] sm:$0xff]
    %v120 = vld [vmem:[#allocation8 + $0xa8] sm:$0xff]
    %v121 = vld [vmem:[#allocation8 + $0xb0] sm:$0xff]
    %v122 = vld [vmem:[#allocation8 + $0xb8] sm:$0xff]
    %v123 = vld [vmem:[#allocation8 + $0xc0] sm:$0xff]
    %v124 = vld [vmem:[#allocation8 + $0xc8] sm:$0xff]
    %v125 = vld [vmem:[#allocation8 + $0xd0] sm:$0xff]
    %v126 = vld [vmem:[#allocation8 + $0xd8] sm:$0xff]
    %v127 = vld [vmem:[#allocation8 + $0xe0] sm:$0xff]
    %v128 = vld [vmem:[#allocation8 + $0xe8] sm:$0xff]
    %v129 = vld [vmem:[#allocation8 + $0xf0] sm:$0xff]
    %v130 = vld [vmem:[#allocation8 + $0xf8] sm:$0xff]
    %v131 = vld [vmem:[#allocation8 + $0x100] sm:$0xff]
    %v132 = vld [vmem:[#allocation8 + $0x108] sm:$0xff]
    %v133 = vld [vmem:[#allocation8 + $0x110] sm:$0xff]
    %v134 = vld [vmem:[#allocation8 + $0x118] sm:$0xff]
    %v135 = vld [vmem:[#allocation8 + $0x120] sm:$0xff]
    %v136 = vld [vmem:[#allocation8 + $0x128] sm:$0xff]
    %v137 = vld [vmem:[#allocation8 + $0x130] sm:$0xff]
    %v138 = vld [vmem:[#allocation8 + $0x138] sm:$0xff]
    %v139 = vld [vmem:[#allocation8 + $0x140] sm:$0xff]
    %v140 = vld [vmem:[#allocation8 + $0x148] sm:$0xff]
    %v141 = vld [vmem:[#allocation8 + $0x150] sm:$0xff]
    %v142 = vld [vmem:[#allocation8 + $0x158] sm:$0xff]
    %v143 = vld [vmem:[#allocation8 + $0x160] sm:$0xff]
    %v144 = vld [vmem:[#allocation8 + $0x168] sm:$0xff]
    %v145 = vld [vmem:[#allocation8 + $0x170] sm:$0xff]
    %v146 = vld [vmem:[#allocation8 + $0x178] sm:$0xff]
    %v147 = vld [vmem:[#allocation8 + $0x180] sm:$0xff]
    %v148 = vld [vmem:[#allocation8 + $0x188] sm:$0xff]
    %v149 = vld [vmem:[#allocation8 + $0x190] sm:$0xff]
    %v150 = vld [vmem:[#allocation8 + $0x198] sm:$0xff]
    %v151 = vld [vmem:[#allocation8 + $0x1a0] sm:$0xff]
    %v152 = vld [vmem:[#allocation8 + $0x1a8] sm:$0xff]
    %v153 = vld [vmem:[#allocation8 + $0x1b0] sm:$0xff]
    %v154 = vld [vmem:[#allocation8 + $0x1b8] sm:$0xff]
    %v155 = vld [vmem:[#allocation8 + $0x1c0] sm:$0xff]
    %v156 = vld [vmem:[#allocation8 + $0x1c8] sm:$0xff]
    %v157 = vld [vmem:[#allocation8 + $0x1d0] sm:$0xff]
    %v158 = vld [vmem:[#allocation8 + $0x1d8] sm:$0xff]
    %v159 = vld [vmem:[#allocation8 + $0x1e0] sm:$0xff]
    %v160 = vld [vmem:[#allocation8 + $0x1e8] sm:$0xff]
    %v161 = vld [vmem:[#allocation8 + $0x1f0] sm:$0xff]
    %v162 = vld [vmem:[#allocation8 + $0x1f8] sm:$0xff]
    %v163 = vld [vmem:[#allocation8 + $0x200] sm:$0xff]
    %v164 = vld [vmem:[#allocation8 + $0x208] sm:$0xff]
    %v165 = vld [vmem:[#allocation8 + $0x210] sm:$0xff]
    %v166 = vld [vmem:[#allocation8 + $0x218] sm:$0xff]
    %v167 = vld [vmem:[#allocation8 + $0x220] sm:$0xff]
    %v168 = vld [vmem:[#allocation8 + $0x228] sm:$0xff]
    %v169 = vld [vmem:[#allocation8 + $0x230] sm:$0xff]
    %v170 = vld [vmem:[#allocation8 + $0x238] sm:$0xff]
    %v171 = vld [vmem:[#allocation8 + $0x240] sm:$0xff]
    %v172 = vld [vmem:[#allocation8 + $0x248] sm:$0xff]
    %v173 = vld [vmem:[#allocation8 + $0x250] sm:$0xff]
    %v174 = vld [vmem:[#allocation8 + $0x258] sm:$0xff]
    %v175 = vld [vmem:[#allocation8 + $0x260] sm:$0xff]
    %v176 = vld [vmem:[#allocation8 + $0x268] sm:$0xff]
    %v177 = vld [vmem:[#allocation8 + $0x270] sm:$0xff]
    %v178 = vld [vmem:[#allocation8 + $0x278] sm:$0xff]
    %v179 = vld [vmem:[#allocation8 + $0x280] sm:$0xff]
    %v180 = vld [vmem:[#allocation8 + $0x288] sm:$0xff]
    %v181 = vld [vmem:[#allocation8 + $0x290] sm:$0xff]
    %v182 = vld [vmem:[#allocation8 + $0x298] sm:$0xff]
    %v183 = vld [vmem:[#allocation8 + $0x2a0] sm:$0xff]
    %v184 = vld [vmem:[#allocation8 + $0x2a8] sm:$0xff]
    %v185 = vld [vmem:[#allocation8 + $0x2b0] sm:$0xff]
    %v186 = vld [vmem:[#allocation8 + $0x2b8] sm:$0xff]
    %v187 = vld [vmem:[#allocation8 + $0x2c0] sm:$0xff]
    %v188 = vld [vmem:[#allocation8 + $0x2c8] sm:$0xff]
    %v189 = vld [vmem:[#allocation8 + $0x2d0] sm:$0xff]
    %v190 = vld [vmem:[#allocation8 + $0x2d8] sm:$0xff]
    %v191 = vld [vmem:[#allocation8 + $0x2e0] sm:$0xff]
    %v192 = vld [vmem:[#allocation8 + $0x2e8] sm:$0xff]
    %v193 = vld [vmem:[#allocation8 + $0x2f0] sm:$0xff]
    %v194 = vld [vmem:[#allocation8 + $0x2f8] sm:$0xff]
    %v195 = vld [vmem:[#allocation8 + $0x300] sm:$0xff]
    %v196 = vld [vmem:[#allocation8 + $0x308] sm:$0xff]
    %v197 = vld [vmem:[#allocation8 + $0x310] sm:$0xff]
    %v198 = vld [vmem:[#allocation8 + $0x318] sm:$0xff]
    %v199 = vld [vmem:[#allocation8 + $0x320] sm:$0xff]
    %v200 = vld [vmem:[#allocation8 + $0x328] sm:$0xff]
    %v201 = vld [vmem:[#allocation8 + $0x330] sm:$0xff]
    %v202 = vld [vmem:[#allocation8 + $0x338] sm:$0xff]
    %v203 = vld [vmem:[#allocation8 + $0x340] sm:$0xff]
    %v204 = vld [vmem:[#allocation8 + $0x348] sm:$0xff]
    %v205 = vld [vmem:[#allocation8 + $0x350] sm:$0xff]
    %v206 = vld [vmem:[#allocation8 + $0x358] sm:$0xff]
    %v207 = vld [vmem:[#allocation8 + $0x360] sm:$0xff]
    %v208 = vld [vmem:[#allocation8 + $0x368] sm:$0xff]
    %v209 = vld [vmem:[#allocation8 + $0x370] sm:$0xff]
    %v210 = vld [vmem:[#allocation8 + $0x378] sm:$0xff]
    %v211 = vld [vmem:[#allocation8 + $0x380] sm:$0xff]
    %v212 = vld [vmem:[#allocation8 + $0x388] sm:$0xff]
    %v213 = vld [vmem:[#allocation8 + $0x390] sm:$0xff]
    %v214 = vld [vmem:[#allocation8 + $0x398] sm:$0xff]
    %v215 = vld [vmem:[#allocation8 + $0x3a0] sm:$0xff]
    %v216 = vld [vmem:[#allocation8 + $0x3a8] sm:$0xff]
    %v217 = vld [vmem:[#allocation8 + $0x3b0] sm:$0xff]
    %v218 = vld [vmem:[#allocation8 + $0x3b8] sm:$0xff]
    %v219 = vld [vmem:[#allocation8 + $0x3c0] sm:$0xff]
    %v220 = vld [vmem:[#allocation8 + $0x3c8] sm:$0xff]
    %v221 = vld [vmem:[#allocation8 + $0x3d0] sm:$0xff]
    %v222 = vld [vmem:[#allocation8 + $0x3d8] sm:$0xff]
    %v223 = vld [vmem:[#allocation8 + $0x3e0] sm:$0xff]
    %v224 = vld [vmem:[#allocation8 + $0x3e8] sm:$0xff]
    %v225 = vld [vmem:[#allocation8 + $0x3f0] sm:$0xff]
    %v226 = vld [vmem:[#allocation8 + $0x3f8] sm:$0xff]
    %v227 = vld [vmem:[%s4] sm:$0x1]
    %v228 = vld [vmem:[#allocation10] sm:$0xff]
    %v229 = vld [vmem:[#allocation10 + $0x8] sm:$0xff]
    %v230 = vld [vmem:[#allocation10 + $0x10] sm:$0xff]
    %v231 = vld [vmem:[#allocation10 + $0x18] sm:$0xff]
    %v232 = vld [vmem:[#allocation10 + $0x20] sm:$0xff]
    %v233 = vld [vmem:[#allocation10 + $0x28] sm:$0xff]
    %v234 = vld [vmem:[#allocation10 + $0x30] sm:$0xff]
    %v235 = vld [vmem:[#allocation10 + $0x38] sm:$0xff]
    %v236 = vld [vmem:[#allocation10 + $0x40] sm:$0xff]
    %v237 = vld [vmem:[#allocation10 + $0x48] sm:$0xff]
    %v238 = vld [vmem:[#allocation10 + $0x50] sm:$0xff]
    %v239 = vld [vmem:[#allocation10 + $0x58] sm:$0xff]
    %v240 = vld [vmem:[#allocation10 + $0x60] sm:$0xff]
    %v241 = vld [vmem:[#allocation10 + $0x68] sm:$0xff]
    %v242 = vld [vmem:[#allocation10 + $0x70] sm:$0xff]
    %v243 = vld [vmem:[#allocation10 + $0x78] sm:$0xff]
    %v244 = vld [vmem:[%s6] sm:$0x1]
    %v245 = vld [vmem:[#allocation2] sm:$0xff]
    %v246 = vld [vmem:[#allocation2 + $0x8] sm:$0xff]
    %v247 = vld [vmem:[#allocation2 + $0x10] sm:$0xff]
    %v248 = vld [vmem:[#allocation2 + $0x18] sm:$0xff]
    %v249 = vld [vmem:[#allocation2 + $0x20] sm:$0xff]
    %v250 = vld [vmem:[#allocation2 + $0x28] sm:$0xff]
    %v251 = vld [vmem:[#allocation2 + $0x30] sm:$0xff]
    %v252 = vld [vmem:[#allocation2 + $0x38] sm:$0xff]
    %v253 = vld [vmem:[#allocation5] sm:$0xff]
    %v254 = vld [vmem:[#allocation5 + $0x8] sm:$0xff]
    %v255 = vld [vmem:[#allocation5 + $0x10] sm:$0xff]
    %v256 = vld [vmem:[#allocation5 + $0x18] sm:$0xff]
    %v257 = vld [vmem:[#allocation5 + $0x20] sm:$0xff]
    %v258 = vld [vmem:[#allocation5 + $0x28] sm:$0xff]
    %v259 = vld [vmem:[#allocation5 + $0x30] sm:$0xff]
    %v260 = vld [vmem:[#allocation5 + $0x38] sm:$0xff]
    %v261 = vld [vmem:[#allocation7] sm:$0xff]
    %v262 = vld [vmem:[#allocation7 + $0x8] sm:$0xff]
    %v263 = vld [vmem:[#allocation7 + $0x10] sm:$0xff]
    %v264 = vld [vmem:[#allocation7 + $0x18] sm:$0xff]
    %v265 = vld [vmem:[#allocation7 + $0x20] sm:$0xff]
    %v266 = vld [vmem:[#allocation7 + $0x28] sm:$0xff]
    %v267 = vld [vmem:[#allocation7 + $0x30] sm:$0xff]
    %v268 = vld [vmem:[#allocation7 + $0x38] sm:$0xff]
    %v270 = vperm.slane %v227, 0
    %272 = vmatpush.msra.mxu0 %v114
    %273 = vmatpush.msra.mxu0 %v113
    %274 = vmatpush.msra.mxu0 %v112
    %275 = vmatpush.msra.mxu0 %v111
    %276 = vmatpush.msra.mxu0 %v110
    %277 = vmatpush.msra.mxu0 %v109
    %278 = vmatpush.msra.mxu0 %v108
    %279 = vmatpush.msra.mxu0 %v107
    %280 = vmatpush.msra.mxu0 %v106
    %281 = vmatpush.msra.mxu0 %v105
    %282 = vmatpush.msra.mxu0 %v104
    %283 = vmatpush.msra.mxu0 %v103
    %284 = vmatpush.msra.mxu0 %v102
    %285 = vmatpush.msra.mxu0 %v101
    %286 = vmatpush.msra.mxu0 %v100
    %287 = vmatpush.msra.mxu0 %v99
    %288 = vmatmul.f32.gmra.mxu0 %v245
    %v289 = vpop.f32.mrf.mxu0
    %v290 = vadd.f32 %v270, %v289
    %291 = vmatmul.f32.gmra.mxu0 %v253
    %v292 = vpop.f32.mrf.mxu0
    %v293 = vadd.f32 %v270, %v292
    %294 = vmatmul.f32.gmra.mxu0 %v261
    %v295 = vpop.f32.mrf.mxu0
    %v296 = vadd.f32 %v270, %v295
    %297 = vdwg.mxu0
    %298 = vmatpush.msra.mxu0 %v130
    %299 = vmatpush.msra.mxu0 %v129
    %300 = vmatpush.msra.mxu0 %v128
    %301 = vmatpush.msra.mxu0 %v127
    %302 = vmatpush.msra.mxu0 %v126
    %303 = vmatpush.msra.mxu0 %v125
    %304 = vmatpush.msra.mxu0 %v124
    %305 = vmatpush.msra.mxu0 %v123
    %306 = vmatpush.msra.mxu0 %v122
    %307 = vmatpush.msra.mxu0 %v121
    %308 = vmatpush.msra.mxu0 %v120
    %309 = vmatpush.msra.mxu0 %v119
    %310 = vmatpush.msra.mxu0 %v118
    %311 = vmatpush.msra.mxu0 %v117
    %312 = vmatpush.msra.mxu0 %v116
    %313 = vmatpush.msra.mxu0 %v115
    %314 = vmatmul.f32.gmra.mxu0 %v246
    %v315 = vpop.f32.mrf.mxu0
    %v316 = vadd.f32 %v290, %v315
    %317 = vmatmul.f32.gmra.mxu0 %v254
    %v318 = vpop.f32.mrf.mxu0
    %v319 = vadd.f32 %v293, %v318
    %320 = vmatmul.f32.gmra.mxu0 %v262
    %v321 = vpop.f32.mrf.mxu0
    %v322 = vadd.f32 %v296, %v321
    %323 = vdwg.mxu0
    %324 = vmatpush.msra.mxu0 %v146
    %325 = vmatpush.msra.mxu0 %v145
    %326 = vmatpush.msra.mxu0 %v144
    %327 = vmatpush.msra.mxu0 %v143
    %328 = vmatpush.msra.mxu0 %v142
    %329 = vmatpush.msra.mxu0 %v141
    %330 = vmatpush.msra.mxu0 %v140
    %331 = vmatpush.msra.mxu0 %v139
    %332 = vmatpush.msra.mxu0 %v138
    %333 = vmatpush.msra.mxu0 %v137
    %334 = vmatpush.msra.mxu0 %v136
    %335 = vmatpush.msra.mxu0 %v135
    %336 = vmatpush.msra.mxu0 %v134
    %337 = vmatpush.msra.mxu0 %v133
    %338 = vmatpush.msra.mxu0 %v132
    %339 = vmatpush.msra.mxu0 %v131
    %340 = vmatmul.f32.gmra.mxu0 %v247
    %v341 = vpop.f32.mrf.mxu0
    %v342 = vadd.f32 %v316, %v341
    %343 = vmatmul.f32.gmra.mxu0 %v255
    %v344 = vpop.f32.mrf.mxu0
    %v345 = vadd.f32 %v319, %v344
    %346 = vmatmul.f32.gmra.mxu0 %v263
    %v347 = vpop.f32.mrf.mxu0
    %v348 = vadd.f32 %v322, %v347
    %349 = vdwg.mxu0
    %350 = vmatpush.msra.mxu0 %v162
    %351 = vmatpush.msra.mxu0 %v161
    %352 = vmatpush.msra.mxu0 %v160
    %353 = vmatpush.msra.mxu0 %v159
    %354 = vmatpush.msra.mxu0 %v158
    %355 = vmatpush.msra.mxu0 %v157
    %356 = vmatpush.msra.mxu0 %v156
    %357 = vmatpush.msra.mxu0 %v155
    %358 = vmatpush.msra.mxu0 %v154
    %359 = vmatpush.msra.mxu0 %v153
    %360 = vmatpush.msra.mxu0 %v152
    %361 = vmatpush.msra.mxu0 %v151
    %362 = vmatpush.msra.mxu0 %v150
    %363 = vmatpush.msra.mxu0 %v149
    %364 = vmatpush.msra.mxu0 %v148
    %365 = vmatpush.msra.mxu0 %v147
    %366 = vmatmul.f32.gmra.mxu0 %v248
    %v367 = vpop.f32.mrf.mxu0
    %v368 = vadd.f32 %v342, %v367
    %369 = vmatmul.f32.gmra.mxu0 %v256
    %v370 = vpop.f32.mrf.mxu0
    %v371 = vadd.f32 %v345, %v370
    %372 = vmatmul.f32.gmra.mxu0 %v264
    %v373 = vpop.f32.mrf.mxu0
    %v374 = vadd.f32 %v348, %v373
    %375 = vdwg.mxu0
    %376 = vmatpush.msra.mxu0 %v178
    %377 = vmatpush.msra.mxu0 %v177
    %378 = vmatpush.msra.mxu0 %v176
    %379 = vmatpush.msra.mxu0 %v175
    %380 = vmatpush.msra.mxu0 %v174
    %381 = vmatpush.msra.mxu0 %v173
    %382 = vmatpush.msra.mxu0 %v172
    %383 = vmatpush.msra.mxu0 %v171
    %384 = vmatpush.msra.mxu0 %v170
    %385 = vmatpush.msra.mxu0 %v169
    %386 = vmatpush.msra.mxu0 %v168
    %387 = vmatpush.msra.mxu0 %v167
    %388 = vmatpush.msra.mxu0 %v166
    %389 = vmatpush.msra.mxu0 %v165
    %390 = vmatpush.msra.mxu0 %v164
    %391 = vmatpush.msra.mxu0 %v163
    %392 = vmatmul.f32.gmra.mxu0 %v249
    %v393 = vpop.f32.mrf.mxu0
    %v394 = vadd.f32 %v368, %v393
    %395 = vmatmul.f32.gmra.mxu0 %v257
    %v396 = vpop.f32.mrf.mxu0
    %v397 = vadd.f32 %v371, %v396
    %398 = vmatmul.f32.gmra.mxu0 %v265
    %v399 = vpop.f32.mrf.mxu0
    %v400 = vadd.f32 %v374, %v399
    %401 = vdwg.mxu0
    %402 = vmatpush.msra.mxu0 %v194
    %403 = vmatpush.msra.mxu0 %v193
    %404 = vmatpush.msra.mxu0 %v192
    %405 = vmatpush.msra.mxu0 %v191
    %406 = vmatpush.msra.mxu0 %v190
    %407 = vmatpush.msra.mxu0 %v189
    %408 = vmatpush.msra.mxu0 %v188
    %409 = vmatpush.msra.mxu0 %v187
    %410 = vmatpush.msra.mxu0 %v186
    %411 = vmatpush.msra.mxu0 %v185
    %412 = vmatpush.msra.mxu0 %v184
    %413 = vmatpush.msra.mxu0 %v183
    %414 = vmatpush.msra.mxu0 %v182
    %415 = vmatpush.msra.mxu0 %v181
    %416 = vmatpush.msra.mxu0 %v180
    %417 = vmatpush.msra.mxu0 %v179
    %418 = vmatmul.f32.gmra.mxu0 %v250
    %v419 = vpop.f32.mrf.mxu0
    %v420 = vadd.f32 %v394, %v419
    %421 = vmatmul.f32.gmra.mxu0 %v258
    %v422 = vpop.f32.mrf.mxu0
    %v423 = vadd.f32 %v397, %v422
    %424 = vmatmul.f32.gmra.mxu0 %v266
    %v425 = vpop.f32.mrf.mxu0
    %v426 = vadd.f32 %v400, %v425
    %427 = vdwg.mxu0
    %428 = vmatpush.msra.mxu0 %v210
    %429 = vmatpush.msra.mxu0 %v209
    %430 = vmatpush.msra.mxu0 %v208
    %431 = vmatpush.msra.mxu0 %v207
    %432 = vmatpush.msra.mxu0 %v206
    %433 = vmatpush.msra.mxu0 %v205
    %434 = vmatpush.msra.mxu0 %v204
    %435 = vmatpush.msra.mxu0 %v203
    %436 = vmatpush.msra.mxu0 %v202
    %437 = vmatpush.msra.mxu0 %v201
    %438 = vmatpush.msra.mxu0 %v200
    %439 = vmatpush.msra.mxu0 %v199
    %440 = vmatpush.msra.mxu0 %v198
    %441 = vmatpush.msra.mxu0 %v197
    %442 = vmatpush.msra.mxu0 %v196
    %443 = vmatpush.msra.mxu0 %v195
    %444 = vmatmul.f32.gmra.mxu0 %v251
    %v445 = vpop.f32.mrf.mxu0
    %v446 = vadd.f32 %v420, %v445
    %447 = vmatmul.f32.gmra.mxu0 %v259
    %v448 = vpop.f32.mrf.mxu0
    %v449 = vadd.f32 %v423, %v448
    %450 = vmatmul.f32.gmra.mxu0 %v267
    %v451 = vpop.f32.mrf.mxu0
    %v452 = vadd.f32 %v426, %v451
    %453 = vdwg.mxu0
    %454 = vmatpush.msra.mxu0 %v226
    %455 = vmatpush.msra.mxu0 %v225
    %456 = vmatpush.msra.mxu0 %v224
    %457 = vmatpush.msra.mxu0 %v223
    %458 = vmatpush.msra.mxu0 %v222
    %459 = vmatpush.msra.mxu0 %v221
    %460 = vmatpush.msra.mxu0 %v220
    %461 = vmatpush.msra.mxu0 %v219
    %462 = vmatpush.msra.mxu0 %v218
    %463 = vmatpush.msra.mxu0 %v217
    %464 = vmatpush.msra.mxu0 %v216
    %465 = vmatpush.msra.mxu0 %v215
    %466 = vmatpush.msra.mxu0 %v214
    %467 = vmatpush.msra.mxu0 %v213
    %468 = vmatpush.msra.mxu0 %v212
    %469 = vmatpush.msra.mxu0 %v211
    %470 = vmatmul.f32.gmra.mxu0 %v252
    %v471 = vpop.f32.mrf.mxu0
    %v472 = vadd.f32 %v446, %v471
    %473 = vmatmul.f32.gmra.mxu0 %v260
    %v474 = vpop.f32.mrf.mxu0
    %v475 = vadd.f32 %v449, %v474
    %476 = vmatmul.f32.gmra.mxu0 %v268
    %v477 = vpop.f32.mrf.mxu0
    %v478 = vadd.f32 %v452, %v477
    %479 = vdwg.mxu0
    %v480 = vmax.f32 %v472, 0.0
    %v481 = vmax.f32 %v475, 0.0
    %v482 = vmax.f32 %v478, 0.0
    %v484 = vperm.slane %v244, 0
    %486 = vmatpush.msra.mxu0 %v243
    %487 = vmatpush.msra.mxu0 %v242
    %488 = vmatpush.msra.mxu0 %v241
    %489 = vmatpush.msra.mxu0 %v240
    %490 = vmatpush.msra.mxu0 %v239
    %491 = vmatpush.msra.mxu0 %v238
    %492 = vmatpush.msra.mxu0 %v237
    %493 = vmatpush.msra.mxu0 %v236
    %494 = vmatpush.msra.mxu0 %v235
    %495 = vmatpush.msra.mxu0 %v234
    %496 = vmatpush.msra.mxu0 %v233
    %497 = vmatpush.msra.mxu0 %v232
    %498 = vmatpush.msra.mxu0 %v231
    %499 = vmatpush.msra.mxu0 %v230
    %500 = vmatpush.msra.mxu0 %v229
    %501 = vmatpush.msra.mxu0 %v228
    %502 = vmatmul.f32.gmra.mxu0 %v480
    %v503 = vpop.f32.mrf.mxu0
    %v504 = vadd.f32 %v484, %v503
    %505 = vmatmul.f32.gmra.mxu0 %v481
    %v506 = vpop.f32.mrf.mxu0
    %v507 = vadd.f32 %v484, %v506
    %508 = vmatmul.f32.gmra.mxu0 %v482
    %v509 = vpop.f32.mrf.mxu0
    %v510 = vadd.f32 %v484, %v509
    %511 = vdwg.mxu0
    %v512 = vlaneseq
    %v513 = vand.u32 %v512, 127
    %vm514 = vcmp.lt.s32.totalorder %v513, 32
    %v515 = vsub.f32 %v480, %v481
    %v516 = vadd.f32 %v515, 1e-06
    %v517 = vsel %vm514, %v516, 0.0
    %v518 = vsub.f32 %v480, %v482
    %v519 = vadd.f32 %v518, 1e-06
    %v520 = vsel %vm514, %v519, 0.0
    %v521 = vmul.f32 %v517, %v517
    %522 = vadd.xlane.f32.xlu0 %v521
    %v523 = vpop.xlane.xlu0 %522
    %v524 = vrsqrt.pop %v523
    %v525 = vmul.f32 %v524, %v523
    %v526 = vmul.f32 %v525, %v524
    %v527 = vmul.f32 0.5, %v526
    %v528 = vsub.f32 1.5, %v527
    %v529 = vmul.f32 %v524, %v528
    %v530 = vmul.f32 %v523, %v529
    %vm531 = vcmp.eq.f32.partialorder %v523, inf
    %v532 = vsel %vm531, %v523, %v530
    %vm533 = vcmp.eq.f32.partialorder %v523, 0.0
    %v534 = vand.u32 %v523, 2147483648
    %v535 = vsel %vm533, %v534, %v532
    %v536 = vmul.f32 %v520, %v520
    %537 = vadd.xlane.f32.xlu0 %v536
    %v538 = vpop.xlane.xlu0 %537
    %v539 = vrsqrt.pop %v538
    %v540 = vmul.f32 %v539, %v538
    %v541 = vmul.f32 %v540, %v539
    %v542 = vmul.f32 0.5, %v541
    %v543 = vsub.f32 1.5, %v542
    %v544 = vmul.f32 %v539, %v543
    %v545 = vmul.f32 %v538, %v544
    %vm546 = vcmp.eq.f32.partialorder %v538, inf
    %v547 = vsel %vm546, %v538, %v545
    %vm548 = vcmp.eq.f32.partialorder %v538, 0.0
    %v549 = vand.u32 %v538, 2147483648
    %v550 = vsel %vm548, %v549, %v547
    %vm551 = vcmp.eq.s32.totalorder %v513, 0
    %vm552 = vcmp.eq.s32.totalorder %v513, 1
    %v553 = vsel %vm552, %v550, 0.0
    %v554 = vsel %vm551, %v535, %v553
    %555 = vst [vmem:[#allocation11] sm:$0xff] %v504
    %556 = vst [vmem:[#allocation11 + $0x8] sm:$0xff] %v507
    %557 = vst [vmem:[#allocation11 + $0x10] sm:$0xff] %v510
    %558 = vst [vmem:[#allocation11 + $0x18] sm:$0xff] %v554
    // Predicated region
    $region50: #{tpu_custom_call.1} parent=1 // pred_check
      _
    $region51: #{tpu_custom_call.1} parent=1 // pred_check_branch
      %560 = sbr.rel (0) target = $region53
    $region52: #{tpu_custom_call.1} parent=1 // pred_region
      %562 = vsyncadd [#allocation4], 0
      %s564 = sshll.u32 [#allocation11], 4
      %s565 = int_to_ptr.vmem [resolvable:$true] %s564
      %s566 = sshll.u32 %s7, 4
      %s567 = int_to_ptr.hbm [resolvable:$true] %s566
      %569 = dma.vmem_to_hbm [thread:$0]  %s565, 512, %s567, [#allocation4]
    $region53: #{tpu_custom_call.1} parent=1 // pred_fallthru
      _
    // Predicated region
    $region54: #{tpu_custom_call.1} parent=1 // pred_check
      _
    $region55: #{tpu_custom_call.1} parent=1 // pred_check_branch
      %571 = sbr.rel (0) target = $region57
    $region56: #{tpu_custom_call.1} parent=1 // pred_region
      %573 = dma.done [#allocation4], 512
    $region57: #{tpu_custom_call.1} parent=1 // pred_fallthru
      _
    %574 = vsyncpa [#allocation3], 1
    %575 = vsyncpa [#allocation6], 1
    %576 = vsyncpa [#allocation9], 1
    %577 = vsyncpa [#allocation4], 1

</llo_original>
